<compile_context>
chip_gen: v6e
topology: v6e:2x2x1
jax: 0.10.0
libtpu: 0.0.40
codegen_flags: <defaults>
</compile_context>

<pallas_src>
import functools
import math

import jax
import jax.numpy as jnp
from jax.experimental import pallas as pl
from jax.experimental.pallas import tpu as pltpu

LANE = 128
SUBLANE = 8
NEG_MASK = -9.0e15   # simAGG "zero_vec" constant from the PyTorch module
NEG_PAD = -1.0e30    # padded key rows / padded class cols (strictly < NEG_MASK)


def _round_up(x, m):
    return (x + m - 1) // m * m


# ---------------------------------------------------------------------------
# Pass 1: h = x @ W + B   (collapsed affine chain; row-tiled, weights resident)
# ---------------------------------------------------------------------------
def _affine_kernel(x_ref, w_ref, b_ref, h_ref):
    h = jnp.dot(x_ref[...], w_ref[...],
                preferred_element_type=jnp.float32) + b_ref[...]
    h_ref[...] = h.astype(h_ref.dtype)


# ---------------------------------------------------------------------------
# Pass 2: flash-style simAGG + log_softmax over the real classes.
# Grid: (query row blocks [parallel], key row blocks [arbitrary, reduction]).
# ---------------------------------------------------------------------------
def _simagg_kernel(hq_ref, hk_ref, o_ref, m_sc, l_sc, acc_sc, *,
                   block_k, n_true, num_class):
    j = pl.program_id(1)

    @pl.when(j == 0)
    def _():
        m_sc[...] = jnp.full_like(m_sc, -jnp.inf)
        l_sc[...] = jnp.zeros_like(l_sc)
        acc_sc[...] = jnp.zeros_like(acc_sc)

    hq = hq_ref[...]          # bf16
    hk = hk_ref[...]          # bf16

    # s = hq @ hk.T without an explicit transpose (contract the last dims);
    # bf16 inputs, f32 accumulation on the MXU.
    s = jax.lax.dot_general(hq, hk, (((1,), (1,)), ((), ())),
                            preferred_element_type=jnp.float32)

    # simAGG mask: keep only strictly positive similarities.
    s = jnp.where(s > 0, s, NEG_MASK)

    def update(scores):
        m_prev = m_sc[...]
        m_new = jnp.maximum(m_prev, jnp.max(scores, axis=1, keepdims=True))
        alpha = jnp.exp(m_prev - m_new)
        p = jnp.exp(scores - m_new)
        l_sc[...] = alpha * l_sc[...] + jnp.sum(p, axis=1, keepdims=True)
        acc_sc[...] = alpha * acc_sc[...] + jnp.dot(
            p.astype(hk.dtype), hk, preferred_element_type=jnp.float32)
        m_sc[...] = m_new

    # Only key blocks that actually contain padded node rows pay for the
    # iota/compare/select padding mask; all other blocks take the clean path.
    has_pad = (j + 1) * block_k > n_true

    @pl.when(jnp.logical_not(has_pad))
    def _():
        update(s)

    @pl.when(has_pad)
    def _():
        key_idx = j * block_k + jax.lax.broadcasted_iota(jnp.int32, s.shape, 1)
        # NEG_PAD < NEG_MASK is load-bearing: padded keys must rank strictly
        # below real keys even when a row has no strictly-positive similarity.
        update(jnp.where(key_idx < n_true, s, NEG_PAD))

    @pl.when(j == pl.num_programs(1) - 1)
    def _():
        # Exact divide: runs once per query block, and the approx-EUP
        # reciprocal error is not cancelled by the subsequent log_softmax.
        agg = acc_sc[...] / l_sc[...]
        # log_softmax over real class columns only (padded columns are exactly
        # zero and must not contribute to the lse).
        lane = jax.lax.broadcasted_iota(jnp.int32, agg.shape, 1)
        masked = jnp.where(lane < num_class, agg, NEG_PAD)
        m2 = jnp.max(masked, axis=1, keepdims=True)
        lse = jnp.log(jnp.sum(jnp.exp(masked - m2), axis=1, keepdims=True))
        o_ref[...] = (agg - m2 - lse).astype(o_ref.dtype)


# ---------------------------------------------------------------------------
# Wrapper
# ---------------------------------------------------------------------------
def simgcn_forward(x, w1, b1, w2, b2, w3, b3, *,
                   block_rows=512, block_q=512, block_k=512,
                   vmem_limit_bytes=32 * 1024 * 1024):
    n, num_dim = x.shape
    num_class = w3.shape[1]
    f32 = jnp.float32
    bf16 = jnp.bfloat16

    # Lane-dense class dimension (zero-padded columns -> sliced at the end).
    cp = _round_up(num_class, LANE)

    # Collapse the activation-free linear chain into one affine map in plain
    # XLA: W = w1@w2@w3 (padded to cp), B = (b1@w2 + b2)@w3 + b3.
    w1f, w2f, w3f = w1.astype(f32), w2.astype(f32), w3.astype(f32)
    b1f = b1.reshape(1, -1).astype(f32)
    b2f = b2.reshape(1, -1).astype(f32)
    b3f = b3.reshape(1, -1).astype(f32)
    w_eff = w1f @ w2f @ w3f
    b_eff = (b1f @ w2f + b2f) @ w3f + b3f
    w_p = jnp.zeros((num_dim, cp), f32).at[:, :num_class].set(w_eff)
    b_p = jnp.zeros((1, cp), f32).at[:, :num_class].set(b_eff)

    # Tile clamping: multiples of 8, no larger than the (rounded) node count.
    # Node dim padded once to lcm(block_q, block_k); block_rows forced to
    # divide it so both passes share the same padded h.
    n8 = _round_up(n, SUBLANE)
    block_q = min(_round_up(block_q, SUBLANE), n8)
    block_k = min(_round_up(block_k, SUBLANE), n8)
    block_rows = min(_round_up(block_rows, SUBLANE), n8)
    n_pad = _round_up(n, math.lcm(block_q, block_k))
    if n_pad % block_rows:
        block_rows = math.gcd(block_rows, n_pad)

    x_p = jnp.zeros((n_pad, num_dim), f32).at[:n].set(x.astype(f32))

    resident = lambda i: (0, 0)

    # --- pass 1: h = x @ W + B (bf16 output, memory-bound skinny matmul) ----
    h = pl.pallas_call(
        _affine_kernel,
        out_shape=jax.ShapeDtypeStruct((n_pad, cp), bf16),
        grid_spec=pltpu.PrefetchScalarGridSpec(
            num_scalar_prefetch=0,
            grid=(n_pad // block_rows,),
            in_specs=[
                pl.BlockSpec((block_rows, num_dim), lambda i: (i, 0)),
                pl.BlockSpec((num_dim, cp), resident),
                pl.BlockSpec((1, cp), resident),
            ],
            out_specs=pl.BlockSpec((block_rows, cp), lambda i: (i, 0)),
        ),
        compiler_params=pltpu.CompilerParams(
            dimension_semantics=("parallel",),
            vmem_limit_bytes=vmem_limit_bytes),
        cost_estimate=pl.CostEstimate(
            flops=2 * n_pad * num_dim * cp,
            transcendentals=0,
            bytes_accessed=4 * (n_pad * num_dim + num_dim * cp + cp)
                           + 2 * n_pad * cp),
    )(x_p, w_p, b_p)

    # --- pass 2: flash-style simAGG + log_softmax ----------------------------
    # TODO(synk): on v5e it can pay to recompute h per key block from x/W/B
    # inside this kernel instead of re-streaming h from HBM.
    grid = (n_pad // block_q, n_pad // block_k)
    kern = functools.partial(_simagg_kernel, block_k=block_k,
                             n_true=n, num_class=num_class)
    out_p = pl.pallas_call(
        kern,
        out_shape=jax.ShapeDtypeStruct((n_pad, cp), f32),
        grid_spec=pltpu.PrefetchScalarGridSpec(
            num_scalar_prefetch=0,
            grid=grid,
            in_specs=[
                pl.BlockSpec((block_q, cp), lambda i, j: (i, 0)),
                pl.BlockSpec((block_k, cp), lambda i, j: (j, 0)),
            ],
            out_specs=pl.BlockSpec((block_q, cp), lambda i, j: (i, 0)),
            scratch_shapes=[
                pltpu.VMEM((block_q, 1), f32),   # running max
                pltpu.VMEM((block_q, 1), f32),   # running sum
                pltpu.VMEM((block_q, cp), f32),  # running aggregate
            ],
        ),
        compiler_params=pltpu.CompilerParams(
            dimension_semantics=("parallel", "arbitrary"),
            vmem_limit_bytes=vmem_limit_bytes),
        cost_estimate=pl.CostEstimate(
            flops=4 * n_pad * n_pad * cp + 6 * n_pad * n_pad,
            transcendentals=n_pad * n_pad,
            bytes_accessed=2 * n_pad * cp * (1 + grid[0]) + 4 * n_pad * cp),
    )(h, h)

    return out_p[:n, :num_class]


def init_params(key, num_dim, hidden_dim, num_class):
    """Deterministic synthetic init (uniform, roughly nn.Linear scale)."""
    ks = jax.random.split(key, 6)

    def lin(kw, kb, fan_in, fan_out):
        bound = 1.0 / jnp.sqrt(fan_in)
        w = jax.random.uniform(kw, (fan_in, fan_out), jnp.float32, -bound, bound)
        b = jax.random.uniform(kb, (1, fan_out), jnp.float32, -bound, bound)
        return w, b

    w1, b1 = lin(ks[0], ks[1], num_dim, hidden_dim)
    w2, b2 = lin(ks[2], ks[3], hidden_dim, hidden_dim)
    w3, b3 = lin(ks[4], ks[5], hidden_dim, num_class)
    return w1, b1, w2, b2, w3, b3


if __name__ == "__main__":
    N = 45          # graph nodes (deliberately not a tile multiple: tests masking)
    NUM_DIM = 32    # input feature dim
    HIDDEN = 16     # module's hidden_dim
    NUM_CLASS = 4   # number of classes

    key = jax.random.PRNGKey(0)
    kx, kp = jax.random.split(key)
    x = jax.random.normal(kx, (N, NUM_DIM), jnp.float32)
    params = init_params(kp, NUM_DIM, HIDDEN, NUM_CLASS)

    # Small tiles so the demo exercises a multi-block grid, the online softmax
    # and the padded-key-block fast/slow paths (defaults are 512 for real use).
    out = simgcn_forward(x, *params, block_rows=16, block_q=16, block_k=16)
    jax.block_until_ready(out)

    # Pure-JAX f32 reference of the same inference-mode forward.
    w1, b1, w2, b2, w3, b3 = params
    h = x @ w1 + b1
    h = h @ w2 + b2
    h = h @ w3 + b3
    adj = h @ h.T
    a = jnp.where(adj > 0, adj, jnp.float32(-9.0e15))
    sim1 = jax.nn.softmax(a, axis=1)
    agg = sim1 @ h
    ref = jax.nn.log_softmax(agg, axis=1)

    assert out.shape == (N, NUM_CLASS)
    # Tolerance accounts for the bf16 h / bf16 softmax-weight matmuls.
    err = float(jnp.max(jnp.abs(out - ref)))
    assert jnp.allclose(out, ref, atol=2e-2, rtol=2e-2), (
        f"mismatch vs reference: max abs err {err}")
    print("KERNEL_OK")
</pallas_src>

<mosaic_0001>
module attributes {stable_mosaic.version = 11 : i64} {
  func.func @_affine_kernel(%arg0: i32, %arg1: memref<16x32xf32, #tpu.memory_space<vmem>>, %arg2: memref<32x128xf32, #tpu.memory_space<vmem>>, %arg3: memref<1x128xf32, #tpu.memory_space<vmem>>, %arg4: memref<16x128xbf16, #tpu.memory_space<vmem>>) attributes {dimension_semantics = [#tpu.dimension_semantics<parallel>], iteration_bounds = array<i64: 3>, scalar_prefetch = 0 : i64, scratch_operands = 0 : i64, tpu.core_type = #tpu.core_type<tc>, window_params = [{transform_indices = @transform_0, window_bounds = array<i64: 16, 32>}, {pipeline_mode = #tpu.pipeline_mode<synchronous>, transform_indices = @transform_1, window_bounds = array<i64: 32, 128>}, {pipeline_mode = #tpu.pipeline_mode<synchronous>, transform_indices = @transform_2, window_bounds = array<i64: 1, 128>}, {transform_indices = @transform_3, window_bounds = array<i64: 16, 128>}]} {
    %c0 = arith.constant 0 : index
    %c0_0 = arith.constant 0 : index
    %0 = vector.load %arg1[%c0, %c0_0] : memref<16x32xf32, #tpu.memory_space<vmem>>, vector<16x32xf32>
    %c0_1 = arith.constant 0 : index
    %c0_2 = arith.constant 0 : index
    %1 = vector.load %arg2[%c0_1, %c0_2] : memref<32x128xf32, #tpu.memory_space<vmem>>, vector<32x128xf32>
    %cst = arith.constant dense<0.000000e+00> : vector<16x128xf32>
    %2 = tpu.matmul %0, %1, %cst {dimension_numbers = #tpu.dot_dimension_numbers<[1], [0], [0], [1], [0, 0, 1, 1], [], []>} : vector<16x32xf32>, vector<32x128xf32>, vector<16x128xf32> -> vector<16x128xf32>
    %c0_3 = arith.constant 0 : index
    %c0_4 = arith.constant 0 : index
    %3 = vector.load %arg3[%c0_3, %c0_4] : memref<1x128xf32, #tpu.memory_space<vmem>>, vector<1x128xf32>
    %4 = vector.broadcast %3 : vector<1x128xf32> to vector<16x128xf32>
    %5 = arith.addf %2, %4 : vector<16x128xf32>
    %6 = arith.truncf %5 : vector<16x128xf32> to vector<16x128xbf16>
    %c0_5 = arith.constant 0 : index
    %c0_6 = arith.constant 0 : index
    %7 = vector.load %arg4[%c0_5, %c0_6] : memref<16x128xbf16, #tpu.memory_space<vmem>>, vector<16x128xbf16>
    tpu.vector_store %arg4[%c0_5, %c0_6], %6 {strides = array<i32>} : memref<16x128xbf16, #tpu.memory_space<vmem>>, vector<16x128xbf16>,
    return
  }
  func.func @transform_0(%arg0: i32) -> (i32, i32) {
    %c0_i32 = arith.constant 0 : i32
    %c0_i32_0 = arith.constant 0 : i32
    return %arg0, %c0_i32 : i32, i32
  }
  func.func @transform_1(%arg0: i32) -> (i32, i32) {
    %c0_i32 = arith.constant 0 : i32
    %c0_i32_0 = arith.constant 0 : i32
    %c0_i32_1 = arith.constant 0 : i32
    return %c0_i32, %c0_i32_0 : i32, i32
  }
  func.func @transform_2(%arg0: i32) -> (i32, i32) {
    %c0_i32 = arith.constant 0 : i32
    %c0_i32_0 = arith.constant 0 : i32
    %c0_i32_1 = arith.constant 0 : i32
    return %c0_i32, %c0_i32_0 : i32, i32
  }
  func.func @transform_3(%arg0: i32) -> (i32, i32) {
    %c0_i32 = arith.constant 0 : i32
    %c0_i32_0 = arith.constant 0 : i32
    return %arg0, %c0_i32 : i32, i32
  }
}

</mosaic_0001>

<llo_original>
// kernel: tpu_custom_call.1
$region0: #{tpu_custom_call.1}
  #allocation0 [shape = 'u32[]', space=smem, size = 0x4, offset = 0x4, fixed_abs, tag = 'smem constant byte address 0x4 - core index']
  #allocation1 [shape = 'u32[144,128]{1,0:T(1,128)}', space=vmem, size = 0x12000, scoped, tag = 'internal scratch']
  %s0 = inlined_call_operand.vmem [shape: f32[48,32], index: 0, kind: input, shape index: {}]
  %s1 = inlined_call_operand.vmem [shape: f32[32,128], index: 1, kind: input, shape index: {}]
  %s2 = inlined_call_operand.vmem [shape: f32[1,128], index: 2, kind: input, shape index: {}]
  %s3 = inlined_call_operand.hbm [shape: bf16[48,128], index: 3, kind: output, shape index: {}]
  %s4 = sld [smem:[#allocation0]]
  $region45: #{tpu_custom_call.1} parent=0
    _
  %s6 = ssub.s32 1, %s4
  %s7 = scalar_select 0, %s6, %s4
  $region1: #{tpu_custom_call.1} parent=0
    #allocation2 [shape = 'u8[8192]{0}', space=vmem, size = 0x2000, scoped, tag = 'output window, operand 0']
    #allocation3 [shape = 's32[2]{0}', space=sflag, size = 0x8, scoped, tag = 'scoped memory for tpu_custom_call.1']
    %8 = vsyncpa [#allocation3], 0
    %s9 = scalar_lea.sflag [#allocation3], 1
    %10 = vsyncpa %s9, 0
    loop: start=0, step=1, limit=5
    $region2: #{tpu_custom_call.1} parent=1 // loop_pre_header
      _
    $region3: #{tpu_custom_call.1} parent=1 // loop_header
      %s12 = sphi 0, %s16
      %p13 = scmp.ge.s32.totalorder %s12, 5
      %s22 = sphi 0, %s24
      %s25 = sphi 0, %s22
      %s26 = sphi 0, %s25
      %s42 = sphi 0, %s26
      %s46 = sphi 0, %s46
      %s48 = sphi 0, %s46
      %s49 = sphi 0, %s48
      %s63 = sphi 0, %s49
      %s67 = sphi 0, %s67
      %s69 = sphi 0, %s67
      %s70 = sphi 0, %s69
      %s84 = sphi 0, %s70
      %s90 = sphi 0, %s92
      %s93 = sphi 0, %s90
      %s94 = sphi 0, %s93
      %s110 = sphi 0, %s94
    $region4: #{tpu_custom_call.1} parent=1 // loop_header_branch
      %15 = sbr.rel (%p13) target = $region8
    $region5: #{tpu_custom_call.1} parent=1 // loop_body
      %s17 = ssub.s32 %s12, 1
      %s18 = ssub.s32 %s12, 2
      %s19 = sadd.s32 %s12, 1
      %s20 = ssub.s32 %s12, %s19
      %p21 = scmp.eq.s32.totalorder %s20, 0
      %s23 = sadd.s32 %s22, 1
      %s24 = scalar_select %p21, %s22, %s23
      %p27 = pneg %p21
      %p28 = scmp.eq.s32.totalorder %s12, 2
      %p29 = por %p27, %p28
      %p30 = scmp.ne.s32.totalorder %s22, %s25
      %p31 = scmp.eq.s32.totalorder %s12, 0
      %p32 = por %p30, %p31
      %p33 = scmp.ne.s32.totalorder %s22, %s25
      %p34 = scmp.eq.s32.totalorder %s17, 2
      %p35 = por %p33, %p34
      %p36 = scmp.ne.s32.totalorder %s25, %s26
      %p37 = scmp.eq.s32.totalorder %s17, 0
      %p38 = por %p36, %p37
      %p39 = scmp.ne.s32.totalorder %s25, %s26
      %p40 = scmp.eq.s32.totalorder %s18, 2
      %p41 = por %p39, %p40
      %p43 = scmp.ne.s32.totalorder %s26, %s42
      %p44 = scmp.eq.s32.totalorder %s18, 0
      %p45 = por %p43, %p44
      %s47 = sadd.s32 %s46, 1
      %p50 = scmp.eq.s32.totalorder %s12, 2
      %p51 = scmp.ne.s32.totalorder %s46, %s48
      %p52 = scmp.eq.s32.totalorder %s12, 0
      %p53 = por %p51, %p52
      %p54 = scmp.ne.s32.totalorder %s46, %s48
      %p55 = scmp.eq.s32.totalorder %s17, 2
      %p56 = por %p54, %p55
      %p57 = scmp.ne.s32.totalorder %s48, %s49
      %p58 = scmp.eq.s32.totalorder %s17, 0
      %p59 = por %p57, %p58
      %p60 = scmp.ne.s32.totalorder %s48, %s49
      %p61 = scmp.eq.s32.totalorder %s18, 2
      %p62 = por %p60, %p61
      %p64 = scmp.ne.s32.totalorder %s49, %s63
      %p65 = scmp.eq.s32.totalorder %s18, 0
      %p66 = por %p64, %p65
      %s68 = sadd.s32 %s67, 1
      %p71 = scmp.eq.s32.totalorder %s12, 2
      %p72 = scmp.ne.s32.totalorder %s67, %s69
      %p73 = scmp.eq.s32.totalorder %s12, 0
      %p74 = por %p72, %p73
      %p75 = scmp.ne.s32.totalorder %s67, %s69
      %p76 = scmp.eq.s32.totalorder %s17, 2
      %p77 = por %p75, %p76
      %p78 = scmp.ne.s32.totalorder %s69, %s70
      %p79 = scmp.eq.s32.totalorder %s17, 0
      %p80 = por %p78, %p79
      %p81 = scmp.ne.s32.totalorder %s69, %s70
      %p82 = scmp.eq.s32.totalorder %s18, 2
      %p83 = por %p81, %p82
      %p85 = scmp.ne.s32.totalorder %s70, %s84
      %p86 = scmp.eq.s32.totalorder %s18, 0
      %p87 = por %p85, %p86
      %s88 = ssub.s32 %s12, %s19
      %p89 = scmp.eq.s32.totalorder %s88, 0
      %s91 = sadd.s32 %s90, 1
      %s92 = scalar_select %p89, %s90, %s91
      %p95 = pneg %p89
      %p96 = scmp.eq.s32.totalorder %s12, 2
      %p97 = por %p95, %p96
      %p98 = scmp.ne.s32.totalorder %s90, %s93
      %p99 = scmp.eq.s32.totalorder %s12, 0
      %p100 = por %p98, %p99
      %p101 = scmp.ne.s32.totalorder %s90, %s93
      %p102 = scmp.eq.s32.totalorder %s17, 2
      %p103 = por %p101, %p102
      %p104 = scmp.ne.s32.totalorder %s93, %s94
      %p105 = scmp.eq.s32.totalorder %s17, 0
      %p106 = por %p104, %p105
      %p107 = scmp.ne.s32.totalorder %s93, %s94
      %p108 = scmp.eq.s32.totalorder %s18, 2
      %p109 = por %p107, %p108
      %p111 = scmp.ne.s32.totalorder %s94, %s110
      %p112 = scmp.eq.s32.totalorder %s18, 0
      %p113 = por %p111, %p112
      %p114 = scmp.le.s32.totalorder 1, %s12
      %p115 = scmp.lt.s32.totalorder %s12, 4
      %p116 = pnand %p114, %p115
      %p117 = pneg %p116
      // Predicated region
      $region9: #{tpu_custom_call.1} parent=5 // pred_check
        _
      $region10: #{tpu_custom_call.1} parent=5 // pred_check_branch
        %119 = sbr.rel (%p116) target = $region12
      $region11: #{tpu_custom_call.1} parent=5 // pred_region
        %s120 = ssub.s32 %s12, 1
        // Predicated region
        $region13: #{tpu_custom_call.1} parent=11 // pred_check
          %p121 = pneg %p59
        $region14: #{tpu_custom_call.1} parent=11 // pred_check_branch
          %123 = sbr.rel (%p121) target = $region16
        $region15: #{tpu_custom_call.1} parent=11 // pred_region
          _
        $region16: #{tpu_custom_call.1} parent=11 // pred_fallthru
          _
        // Predicated region
        $region17: #{tpu_custom_call.1} parent=11 // pred_check
          %p124 = pneg %p80
        $region18: #{tpu_custom_call.1} parent=11 // pred_check_branch
          %126 = sbr.rel (%p124) target = $region20
        $region19: #{tpu_custom_call.1} parent=11 // pred_region
          _
        $region20: #{tpu_custom_call.1} parent=11 // pred_fallthru
          _
      $region12: #{tpu_custom_call.1} parent=5 // pred_fallthru
        _
      %p127 = scmp.lt.s32.totalorder %s12, 3
      // Predicated region
      $region21: #{tpu_custom_call.1} parent=5 // pred_check
        %p128 = pneg %p127
      $region22: #{tpu_custom_call.1} parent=5 // pred_check_branch
        %130 = sbr.rel (%p128) target = $region24
      $region23: #{tpu_custom_call.1} parent=5 // pred_region
        // Predicated region
        $region25: #{tpu_custom_call.1} parent=23 // pred_check
          %p131 = pneg %p32
        $region26: #{tpu_custom_call.1} parent=23 // pred_check_branch
          %133 = sbr.rel (%p131) target = $region28
        $region27: #{tpu_custom_call.1} parent=23 // pred_region
          %s134 = smul.u32 2, %s12
          %p135 = scmp.lt.s32.totalorder %s134, 5
          %s136 = scalar_select %p135, %s134, 5
          %s137 = smul.addr %s136, 8
          %s138 = scalar_lea.vmem %s0, %s137
          %s139 = smul.u32 2, %s12
        $region28: #{tpu_custom_call.1} parent=23 // pred_fallthru
          _
      $region24: #{tpu_custom_call.1} parent=5 // pred_fallthru
        _
      %p140 = scmp.le.s32.totalorder 1, %s12
      %p141 = scmp.lt.s32.totalorder %s12, 4
      %p142 = pnand %p140, %p141
      %p143 = pneg %p142
      // Predicated region
      $region29: #{tpu_custom_call.1} parent=5 // pred_check
        _
      $region30: #{tpu_custom_call.1} parent=5 // pred_check_branch
        %145 = sbr.rel (%p142) target = $region32
      $region31: #{tpu_custom_call.1} parent=5 // pred_region
        %s146 = ssub.s32 %s12, 1
        %s147 = smul.u32 2, %s17
        %p148 = scmp.lt.s32.totalorder %s147, 5
        %s149 = scalar_select %p148, %s147, 5
        %s150 = smul.addr %s149, 8
        %s151 = scalar_lea.vmem %s0, %s150
        %p152 = pneg %p38
        %p153 = pneg %p35
        %p154 = pneg %p59
        %p155 = pneg %p56
        %p156 = pneg %p80
        %p157 = pneg %p77
        %p158 = pneg %p106
        %p159 = pneg %p103
        %s160 = sand.u32 %s93, 1
        %s161 = scalar_lea.sflag [#allocation3], %s160
        %s162 = sand.u32 %s93, 1
        %s163 = smul.addr %s162, 8
        %s164 = scalar_lea.vmem [#allocation2], %s163
        %s165 = smul.u32 2, %s17
        %p166 = scmp.lt.s32.totalorder %s165, 5
        %s167 = scalar_select %p166, %s165, 5
        %s168 = smul.addr %s167, 8
        %s169 = scalar_lea.vmem %s0, %s168
        %s170 = smul.u32 2, %s17
        %s171 = smul.u32 2, %s17
        %v172 = vld [vmem:[%s169] sm:$0xff]
        %v173 = vld [vmem:[%s169 + $0x8] sm:$0xff]
        %v174 = vld [vmem:[%s1] sm:$0xff]
        %v175 = vld [vmem:[%s1 + $0x8] sm:$0xff]
        %v176 = vld [vmem:[%s1 + $0x10] sm:$0xff]
        %v177 = vld [vmem:[%s1 + $0x18] sm:$0xff]
        %v178 = vld [vmem:[%s2] sm:$0x1]
        %v180 = vlaneseq
        %v181 = vshrl.u32 %v180, 7
        %v182 = vsub.s32 0, %v181
        %v183 = vrot.slane %v178, %v182
        %vm185 = vcmask 261120
        %v187 = vsel %vm185, %v172, 0
        %v190 = vsel %vm185, %v173, 0
        %192 = vmatprep.subr.mxu0 0.0
        %193 = vmatpush1.msra.mxu0 0.0
        %194 = vmatprep.subr.mxu0 0.0
        %195 = vmatpush1.msra.mxu0 0.0
        %196 = vmatprep.subr.mxu0 0.0
        %197 = vmatpush1.msra.mxu0 0.0
        %198 = vmatprep.subr.mxu0 0.0
        %199 = vmatpush1.msra.mxu0 0.0
        %200 = vmatprep.subr.mxu0 0.0
        %201 = vmatpush1.msra.mxu0 0.0
        %202 = vmatprep.subr.mxu0 0.0
        %203 = vmatpush1.msra.mxu0 0.0
        %204 = vmatprep.subr.mxu0 0.0
        %205 = vmatpush1.msra.mxu0 0.0
        %206 = vmatprep.subr.mxu0 0.0
        %207 = vmatpush1.msra.mxu0 0.0
        %208 = vmatprep.subr.mxu0 0.0
        %209 = vmatpush1.msra.mxu0 0.0
        %210 = vmatprep.subr.mxu0 0.0
        %211 = vmatpush1.msra.mxu0 0.0
        %212 = vmatprep.subr.mxu0 0.0
        %213 = vmatpush1.msra.mxu0 0.0
        %214 = vmatprep.subr.mxu0 0.0
        %215 = vmatpush1.msra.mxu0 0.0
        %216 = vmatprep.subr.mxu0 0.0
        %217 = vmatpush1.msra.mxu0 %v177
        %218 = vmatprep.subr.mxu0 0.0
        %219 = vmatpush1.msra.mxu0 %v176
        %220 = vmatprep.subr.mxu0 0.0
        %221 = vmatpush1.msra.mxu0 %v175
        %222 = vmatprep.subr.mxu0 0.0
        %223 = vmatpush1.msra.mxu0 %v174
        %224 = vmatprep.subr.mxu0 0.0
        %225 = vmatpush2.msra.mxu0 0.0
        %226 = vmatprep.subr.mxu0 0.0
        %227 = vmatpush2.msra.mxu0 0.0
        %228 = vmatprep.subr.mxu0 0.0
        %229 = vmatpush2.msra.mxu0 0.0
        %230 = vmatprep.subr.mxu0 0.0
        %231 = vmatpush2.msra.mxu0 0.0
        %232 = vmatprep.subr.mxu0 0.0
        %233 = vmatpush2.msra.mxu0 0.0
        %234 = vmatprep.subr.mxu0 0.0
        %235 = vmatpush2.msra.mxu0 0.0
        %236 = vmatprep.subr.mxu0 0.0
        %237 = vmatpush2.msra.mxu0 0.0
        %238 = vmatprep.subr.mxu0 0.0
        %239 = vmatpush2.msra.mxu0 0.0
        %240 = vmatprep.subr.mxu0 0.0
        %241 = vmatpush2.msra.mxu0 0.0
        %242 = vmatprep.subr.mxu0 0.0
        %243 = vmatpush2.msra.mxu0 0.0
        %244 = vmatprep.subr.mxu0 0.0
        %245 = vmatpush2.msra.mxu0 0.0
        %246 = vmatprep.subr.mxu0 0.0
        %247 = vmatpush2.msra.mxu0 0.0
        %248 = vmatprep.subr.mxu0 0.0
        %249 = vmatpush2.msra.mxu0 0.0
        %250 = vmatprep.subr.mxu0 0.0
        %251 = vmatpush2.msra.mxu0 0.0
        %252 = vmatprep.subr.mxu0 0.0
        %253 = vmatpush2.msra.mxu0 0.0
        %254 = vmatprep.subr.mxu0 0.0
        %255 = vmatpush2.msra.mxu0 0.0
        %256 = vmatprep.mubr.f32.mxu0 0.0
        %257 = vmatmul.mubr.f32.gmra.mxu0 %v187
        %v258 = vpop.f32.mrf.mxu0
        %v259 = vadd.f32 %v183, %v258
        %v260 = vpop.f32.mrf.mxu0
        %261 = vmatprep.mubr.f32.mxu0 0.0
        %262 = vmatmul.mubr.f32.gmra.mxu0 %v190
        %v263 = vpop.f32.mrf.mxu0
        %v264 = vadd.f32 %v183, %v263
        %v265 = vpop.f32.mrf.mxu0
        %266 = vdwg.mxu0
        %v267 = vpack.c.bf16 %v264, %v259
        %v269 = vunpack.c.l.b16 %v267
        %v270 = vunpack.c.h.b16 %v267
        %v271 = vpack.c.b16 %v269, %v269
        %v272 = vpack.c.b16 %v270, %v270
        %275 = vst [vmem:[%s164] sm:$0xf] %v271
        %276 = vst [vmem:[%s164 + $0x4] sm:$0xf] %v272
        %s277 = sand.u32 %s93, 1
        %s278 = scalar_lea.sflag [#allocation3], %s277
        %s279 = sand.u32 %s93, 1
        %s280 = smul.addr %s279, 8
        %s281 = scalar_lea.vmem [#allocation2], %s280
        // Predicated region
        $region33: #{tpu_custom_call.1} parent=31 // pred_check
          %p282 = pneg %p103
        $region34: #{tpu_custom_call.1} parent=31 // pred_check_branch
          %284 = sbr.rel (%p282) target = $region36
        $region35: #{tpu_custom_call.1} parent=31 // pred_region
          %s285 = smul.u32 2, %s17
          %s287 = ssub.s32 128, 128
          %288 = vsyncadd %s278, %s287
          %s289 = smul.addr %s285, 64
          %s290 = scalar_lea.hbm %s3, %s289
          %s291 = sshll.u32 %s281, 4
          %s292 = int_to_ptr.vmem [resolvable:$true] %s291
          %297 = dma.vmem_to_hbm [thread:$0]  %s292, 128, %s290, %s278, 64, 64, 4
        $region36: #{tpu_custom_call.1} parent=31 // pred_fallthru
          _
      $region32: #{tpu_custom_call.1} parent=5 // pred_fallthru
        _
      %p298 = scmp.le.s32.totalorder 2, %s12
      // Predicated region
      $region37: #{tpu_custom_call.1} parent=5 // pred_check
        %p299 = pneg %p298
      $region38: #{tpu_custom_call.1} parent=5 // pred_check_branch
        %301 = sbr.rel (%p299) target = $region40
      $region39: #{tpu_custom_call.1} parent=5 // pred_region
        %s302 = ssub.s32 %s12, 2
        // Predicated region
        $region41: #{tpu_custom_call.1} parent=39 // pred_check
          %p303 = pneg %p109
        $region42: #{tpu_custom_call.1} parent=39 // pred_check_branch
          %305 = sbr.rel (%p303) target = $region44
        $region43: #{tpu_custom_call.1} parent=39 // pred_region
          %s306 = sand.u32 %s94, 1
          %s307 = scalar_lea.sflag [#allocation3], %s306
          %s308 = sand.u32 %s94, 1
          %s309 = smul.addr %s308, 8
          %s310 = scalar_lea.vmem [#allocation2], %s309
          %311 = dma.done %s307, 128
        $region44: #{tpu_custom_call.1} parent=39 // pred_fallthru
          _
      $region40: #{tpu_custom_call.1} parent=5 // pred_fallthru
        _
    $region6: #{tpu_custom_call.1} parent=1 // loop_footer
      %s16 = sadd.s32 1, %s12
    $region7: #{tpu_custom_call.1} parent=1 // loop_footer_branch
      %11 = sbr.rel target = $region3
    $region8: #{tpu_custom_call.1} parent=1 // loop_exit
      _
    %312 = vsyncpa [#allocation3], 1
    %s313 = scalar_lea.sflag [#allocation3], 1
    %314 = vsyncpa %s313, 1

</llo_original>
